<compile_context>
chip_gen: v5e
topology: v5e:2x2
jax: 0.10.0
libtpu: 0.0.40
codegen_flags: <defaults>
</compile_context>

<pallas_src>
import jax
import jax.numpy as jnp
from jax.experimental import pallas as pl
from jax.experimental.pallas import tpu as pltpu

ACTION_SIZE = 4
STATE_SIZE = 25 + 1          # 26
HIDDEN = 128
DEFAULT_TILE_B = 1024        # per-grid-step batch tile; working set ~2 MiB even at 2048


def _round_up(n, m):
    return ((n + m - 1) // m) * m


def qnet_kernel(x_ref, w1_ref, b1_ref, w2_ref, b2_ref, w3_ref, b3_ref, o_ref):
    """One batch tile of the fused MLP: 3 MXU matmuls + f32 VPU bias/ReLU epilogue.

    HBM only ever sees the narrow (B, 26) f32 input and (B, 4) f32 output; the
    cast to the MXU operand dtype (bf16 by default) happens here, in VMEM.
    """
    x = x_ref[...].astype(w1_ref.dtype)                                 # [TB, 26]
    h1 = jnp.dot(x, w1_ref[...], preferred_element_type=jnp.float32)   # [TB, 128] f32
    h1 = jnp.maximum(h1 + b1_ref[...], 0.0)                            # ReLU (f32 VPU)
    h2 = jnp.dot(h1.astype(w2_ref.dtype), w2_ref[...],
                 preferred_element_type=jnp.float32)                   # [TB, 128] f32
    h2 = jnp.maximum(h2 + b2_ref[...], 0.0)                            # ReLU (f32 VPU)
    out = jnp.dot(h2.astype(w3_ref.dtype), w3_ref[...],
                  preferred_element_type=jnp.float32)                  # [TB, 4]  f32
    o_ref[...] = (out + b3_ref[...]).astype(o_ref.dtype)               # narrow writeback


def prepare_params(params, compute_dtype=jnp.bfloat16):
    """One-time parameter prep (hoisted out of the per-call hot path).

    Weights go to the MXU operand dtype; biases stay f32 for the VPU epilogue.
    Weights are stored [in_features, out_features] (transposed vs torch), biases [1, out].
    """
    w1, b1, w2, b2, w3, b3 = params
    cd = compute_dtype
    return (w1.astype(cd), b1.astype(jnp.float32),
            w2.astype(cd), b2.astype(jnp.float32),
            w3.astype(cd), b3.astype(jnp.float32))


def qnet_forward(x, prepared, *, tile_b=DEFAULT_TILE_B):
    """x: [B, STATE_SIZE] f32 -> [B, ACTION_SIZE] f32 (same forward as the PyTorch QNet)."""
    w1, b1, w2, b2, w3, b3 = prepared
    B = x.shape[0]

    # Batch tile: multiple of 8 sublanes; aim for >= 2 grid steps when the batch
    # allows (so v7x can shard tiles across both TensorCores), capped at tile_b.
    B8 = _round_up(B, 8)
    tb = min(tile_b, B8)
    if B8 > 8:
        tb = min(tb, _round_up(pl.cdiv(B8, 2), 8))
    tb = max(8, _round_up(tb, 8))
    Bp = _round_up(B, tb)
    xp = x if Bp == B else jnp.pad(x, ((0, Bp - B), (0, 0)))   # cheap: (B, 26) f32 only
    grid = (Bp // tb,)

    w_item = jnp.dtype(w1.dtype).itemsize
    flops = 2 * Bp * (STATE_SIZE * HIDDEN + HIDDEN * HIDDEN + HIDDEN * ACTION_SIZE)
    bytes_accessed = (
        Bp * STATE_SIZE * 4                                                        # x in (f32)
        + (STATE_SIZE * HIDDEN + HIDDEN * HIDDEN + HIDDEN * ACTION_SIZE) * w_item  # weights
        + (2 * HIDDEN + ACTION_SIZE) * 4                                           # biases (f32)
        + Bp * ACTION_SIZE * 4                                                     # out (f32)
    )

    resident = lambda i: (0, 0)   # weights/biases: single VMEM-resident block for all tiles
    out = pl.pallas_call(
        qnet_kernel,
        out_shape=jax.ShapeDtypeStruct((Bp, ACTION_SIZE), jnp.float32),
        grid=grid,
        in_specs=[
            pl.BlockSpec((tb, STATE_SIZE), lambda i: (i, 0)),   # x: raw (B, 26) f32, batch-tiled
            pl.BlockSpec((STATE_SIZE, HIDDEN), resident),       # w1 [26, 128]
            pl.BlockSpec((1, HIDDEN), resident),                # b1
            pl.BlockSpec((HIDDEN, HIDDEN), resident),           # w2
            pl.BlockSpec((1, HIDDEN), resident),                # b2
            pl.BlockSpec((HIDDEN, ACTION_SIZE), resident),      # w3 [128, 4]
            pl.BlockSpec((1, ACTION_SIZE), resident),           # b3
        ],
        out_specs=pl.BlockSpec((tb, ACTION_SIZE), lambda i: (i, 0)),
        compiler_params=pltpu.CompilerParams(
            dimension_semantics=("parallel",),                  # v7x: tiles across both TCs
        ),
        cost_estimate=pl.CostEstimate(
            flops=flops, bytes_accessed=bytes_accessed, transcendentals=0),
    )(xp, w1, b1, w2, b2, w3, b3)

    return out if Bp == B else out[:B]


def init_params(key):
    """Deterministic init mirroring nn.Linear default (uniform +/- 1/sqrt(fan_in)).

    Weights stored transposed vs PyTorch: [in_features, out_features]; biases [1, out].
    """
    def linear(key, fan_in, fan_out):
        kw, kb = jax.random.split(key)
        bound = 1.0 / jnp.sqrt(jnp.float32(fan_in))
        w = jax.random.uniform(kw, (fan_in, fan_out), jnp.float32, -bound, bound)
        b = jax.random.uniform(kb, (1, fan_out), jnp.float32, -bound, bound)
        return w, b

    k1, k2, k3 = jax.random.split(key, 3)
    w1, b1 = linear(k1, STATE_SIZE, HIDDEN)
    w2, b2 = linear(k2, HIDDEN, HIDDEN)
    w3, b3 = linear(k3, HIDDEN, ACTION_SIZE)
    return (w1, b1, w2, b2, w3, b3)


def qnet_reference(x, params):
    """Pure-JAX f32 reference implementing the same forward pass."""
    w1, b1, w2, b2, w3, b3 = params
    h1 = jnp.maximum(x @ w1 + b1, 0.0)
    h2 = jnp.maximum(h1 @ w2 + b2, 0.0)
    return h2 @ w3 + b3


if __name__ == "__main__":
    key = jax.random.PRNGKey(0)
    k_params, k_x1, k_x2 = jax.random.split(key, 3)
    params = init_params(k_params)

    # Small batch (single RL step) and an odd-sized batch exercising the grid/padding path.
    x_small = jax.random.normal(k_x1, (8, STATE_SIZE), jnp.float32)
    x_big = jax.random.normal(k_x2, (100, STATE_SIZE), jnp.float32)

    ref_small = qnet_reference(x_small, params)
    ref_big = qnet_reference(x_big, params)

    # f32 compute path: tight tolerance vs reference.
    p_f32 = prepare_params(params, compute_dtype=jnp.float32)
    out_f32 = jax.block_until_ready(qnet_forward(x_small, p_f32))
    assert out_f32.shape == (8, ACTION_SIZE)
    assert jnp.allclose(out_f32, ref_small, atol=1e-4, rtol=1e-4), "f32 mismatch vs reference"

    # bf16 MXU operand path with f32 accumulation (dominant error = bf16 input quantization).
    p_bf16 = prepare_params(params, compute_dtype=jnp.bfloat16)
    out_bf16 = jax.block_until_ready(qnet_forward(x_small, p_bf16))
    assert jnp.allclose(out_bf16, ref_small, atol=5e-2, rtol=5e-2), "bf16 mismatch vs reference"

    # Multi-tile grid path: B=100 padded to 128, tile_b=32 -> grid=(4,).
    out_grid = jax.block_until_ready(qnet_forward(x_big, p_f32, tile_b=32))
    assert out_grid.shape == (100, ACTION_SIZE)
    assert jnp.allclose(out_grid, ref_big, atol=1e-4, rtol=1e-4), "grid mismatch vs reference"

    print("KERNEL_OK")
</pallas_src>

<mosaic_0001>
module attributes {stable_mosaic.version = 11 : i64} {
  func.func @qnet_kernel(%arg0: i32, %arg1: memref<8x26xf32, #tpu.memory_space<vmem>>, %arg2: memref<26x128xf32, #tpu.memory_space<vmem>>, %arg3: memref<1x128xf32, #tpu.memory_space<vmem>>, %arg4: memref<128x128xf32, #tpu.memory_space<vmem>>, %arg5: memref<1x128xf32, #tpu.memory_space<vmem>>, %arg6: memref<128x4xf32, #tpu.memory_space<vmem>>, %arg7: memref<1x4xf32, #tpu.memory_space<vmem>>, %arg8: memref<8x4xf32, #tpu.memory_space<vmem>>) attributes {dimension_semantics = [#tpu.dimension_semantics<parallel>], iteration_bounds = array<i64: 1>, scalar_prefetch = 0 : i64, scratch_operands = 0 : i64, tpu.core_type = #tpu.core_type<tc>, window_params = [{transform_indices = @transform_0, window_bounds = array<i64: 8, 26>}, {pipeline_mode = #tpu.pipeline_mode<synchronous>, transform_indices = @transform_1, window_bounds = array<i64: 26, 128>}, {pipeline_mode = #tpu.pipeline_mode<synchronous>, transform_indices = @transform_2, window_bounds = array<i64: 1, 128>}, {pipeline_mode = #tpu.pipeline_mode<synchronous>, transform_indices = @transform_3, window_bounds = array<i64: 128, 128>}, {pipeline_mode = #tpu.pipeline_mode<synchronous>, transform_indices = @transform_4, window_bounds = array<i64: 1, 128>}, {pipeline_mode = #tpu.pipeline_mode<synchronous>, transform_indices = @transform_5, window_bounds = array<i64: 128, 4>}, {pipeline_mode = #tpu.pipeline_mode<synchronous>, transform_indices = @transform_6, window_bounds = array<i64: 1, 4>}, {transform_indices = @transform_7, window_bounds = array<i64: 8, 4>}]} {
    %c0 = arith.constant 0 : index
    %c0_0 = arith.constant 0 : index
    %0 = vector.load %arg1[%c0, %c0_0] : memref<8x26xf32, #tpu.memory_space<vmem>>, vector<8x26xf32>
    %c0_1 = arith.constant 0 : index
    %c0_2 = arith.constant 0 : index
    %1 = vector.load %arg2[%c0_1, %c0_2] : memref<26x128xf32, #tpu.memory_space<vmem>>, vector<26x128xf32>
    %cst = arith.constant dense<0.000000e+00> : vector<8x128xf32>
    %2 = tpu.matmul %0, %1, %cst {dimension_numbers = #tpu.dot_dimension_numbers<[1], [0], [0], [1], [0, 0, 1, 1], [], []>} : vector<8x26xf32>, vector<26x128xf32>, vector<8x128xf32> -> vector<8x128xf32>
    %c0_3 = arith.constant 0 : index
    %c0_4 = arith.constant 0 : index
    %3 = vector.load %arg3[%c0_3, %c0_4] : memref<1x128xf32, #tpu.memory_space<vmem>>, vector<1x128xf32>
    %4 = vector.broadcast %3 : vector<1x128xf32> to vector<8x128xf32>
    %5 = arith.addf %2, %4 : vector<8x128xf32>
    %cst_5 = arith.constant 0.000000e+00 : f32
    %6 = vector.broadcast %cst_5 : f32 to vector<8x128xf32>
    %7 = arith.maximumf %5, %6 : vector<8x128xf32>
    %c0_6 = arith.constant 0 : index
    %c0_7 = arith.constant 0 : index
    %8 = vector.load %arg4[%c0_6, %c0_7] : memref<128x128xf32, #tpu.memory_space<vmem>>, vector<128x128xf32>
    %cst_8 = arith.constant dense<0.000000e+00> : vector<8x128xf32>
    %9 = tpu.matmul %7, %8, %cst_8 {dimension_numbers = #tpu.dot_dimension_numbers<[1], [0], [0], [1], [0, 0, 1, 1], [], []>} : vector<8x128xf32>, vector<128x128xf32>, vector<8x128xf32> -> vector<8x128xf32>
    %c0_9 = arith.constant 0 : index
    %c0_10 = arith.constant 0 : index
    %10 = vector.load %arg5[%c0_9, %c0_10] : memref<1x128xf32, #tpu.memory_space<vmem>>, vector<1x128xf32>
    %11 = vector.broadcast %10 : vector<1x128xf32> to vector<8x128xf32>
    %12 = arith.addf %9, %11 : vector<8x128xf32>
    %cst_11 = arith.constant 0.000000e+00 : f32
    %13 = vector.broadcast %cst_11 : f32 to vector<8x128xf32>
    %14 = arith.maximumf %12, %13 : vector<8x128xf32>
    %c0_12 = arith.constant 0 : index
    %c0_13 = arith.constant 0 : index
    %15 = vector.load %arg6[%c0_12, %c0_13] : memref<128x4xf32, #tpu.memory_space<vmem>>, vector<128x4xf32>
    %cst_14 = arith.constant dense<0.000000e+00> : vector<8x4xf32>
    %16 = tpu.matmul %14, %15, %cst_14 {dimension_numbers = #tpu.dot_dimension_numbers<[1], [0], [0], [1], [0, 0, 1, 1], [], []>} : vector<8x128xf32>, vector<128x4xf32>, vector<8x4xf32> -> vector<8x4xf32>
    %c0_15 = arith.constant 0 : index
    %c0_16 = arith.constant 0 : index
    %17 = vector.load %arg7[%c0_15, %c0_16] : memref<1x4xf32, #tpu.memory_space<vmem>>, vector<1x4xf32>
    %18 = vector.broadcast %17 : vector<1x4xf32> to vector<8x4xf32>
    %19 = arith.addf %16, %18 : vector<8x4xf32>
    %c0_17 = arith.constant 0 : index
    %c0_18 = arith.constant 0 : index
    %20 = vector.load %arg8[%c0_17, %c0_18] : memref<8x4xf32, #tpu.memory_space<vmem>>, vector<8x4xf32>
    tpu.vector_store %arg8[%c0_17, %c0_18], %19 {strides = array<i32>} : memref<8x4xf32, #tpu.memory_space<vmem>>, vector<8x4xf32>,
    return
  }
  func.func @transform_0(%arg0: i32) -> (i32, i32) {
    %c0_i32 = arith.constant 0 : i32
    %c0_i32_0 = arith.constant 0 : i32
    return %arg0, %c0_i32 : i32, i32
  }
  func.func @transform_1(%arg0: i32) -> (i32, i32) {
    %c0_i32 = arith.constant 0 : i32
    %c0_i32_0 = arith.constant 0 : i32
    %c0_i32_1 = arith.constant 0 : i32
    return %c0_i32, %c0_i32_0 : i32, i32
  }
  func.func @transform_2(%arg0: i32) -> (i32, i32) {
    %c0_i32 = arith.constant 0 : i32
    %c0_i32_0 = arith.constant 0 : i32
    %c0_i32_1 = arith.constant 0 : i32
    return %c0_i32, %c0_i32_0 : i32, i32
  }
  func.func @transform_3(%arg0: i32) -> (i32, i32) {
    %c0_i32 = arith.constant 0 : i32
    %c0_i32_0 = arith.constant 0 : i32
    %c0_i32_1 = arith.constant 0 : i32
    return %c0_i32, %c0_i32_0 : i32, i32
  }
  func.func @transform_4(%arg0: i32) -> (i32, i32) {
    %c0_i32 = arith.constant 0 : i32
    %c0_i32_0 = arith.constant 0 : i32
    %c0_i32_1 = arith.constant 0 : i32
    return %c0_i32, %c0_i32_0 : i32, i32
  }
  func.func @transform_5(%arg0: i32) -> (i32, i32) {
    %c0_i32 = arith.constant 0 : i32
    %c0_i32_0 = arith.constant 0 : i32
    %c0_i32_1 = arith.constant 0 : i32
    return %c0_i32, %c0_i32_0 : i32, i32
  }
  func.func @transform_6(%arg0: i32) -> (i32, i32) {
    %c0_i32 = arith.constant 0 : i32
    %c0_i32_0 = arith.constant 0 : i32
    %c0_i32_1 = arith.constant 0 : i32
    return %c0_i32, %c0_i32_0 : i32, i32
  }
  func.func @transform_7(%arg0: i32) -> (i32, i32) {
    %c0_i32 = arith.constant 0 : i32
    %c0_i32_0 = arith.constant 0 : i32
    return %arg0, %c0_i32 : i32, i32
  }
}

</mosaic_0001>

<llo_original>
// kernel: tpu_custom_call.1
$region0: #{tpu_custom_call.1}
  #allocation0 [shape = 'u32[]', space=smem, size = 0x4, offset = 0x4, fixed_abs, tag = 'smem constant byte address 0x4 - core index']
  #allocation1 [shape = 'u32[72,128]{1,0:T(1,128)}', space=vmem, size = 0x9000, scoped, tag = 'internal scratch']
  %s0 = inlined_call_operand.hbm [shape: f32[8,26], index: 0, kind: input, shape index: {}]
  %s1 = inlined_call_operand.hbm [shape: f32[26,128], index: 1, kind: input, shape index: {}]
  %s2 = inlined_call_operand.vmem [shape: f32[1,128], index: 2, kind: input, shape index: {}]
  %s3 = inlined_call_operand.vmem [shape: f32[128,128], index: 3, kind: input, shape index: {}]
  %s4 = inlined_call_operand.vmem [shape: f32[1,128], index: 4, kind: input, shape index: {}]
  %s5 = inlined_call_operand.vmem [shape: f32[128,4], index: 5, kind: input, shape index: {}]
  %s6 = inlined_call_operand.vmem [shape: f32[1,4], index: 6, kind: input, shape index: {}]
  %s7 = inlined_call_operand.vmem [shape: f32[8,4], index: 7, kind: output, shape index: {}]
  %s8 = sld [smem:[#allocation0]]
  $region46: #{tpu_custom_call.1} parent=0
    _
  %s10 = ssub.s32 1, %s8
  %s11 = scalar_select 0, %s10, %s8
  $region1: #{tpu_custom_call.1} parent=0
    #allocation2 [shape = 'u8[4096]{0}', space=vmem, size = 0x1000, scoped, tag = 'input window, operand 0, single buffered']
    #allocation3 [shape = 's32[1]{0}', space=sflag, size = 0x4, scoped, tag = 'scoped memory for tpu_custom_call.1']
    #allocation4 [shape = 'u8[16384]{0}', space=vmem, size = 0x4000, scoped, tag = 'input window, operand 1, single buffered']
    #allocation5 [shape = 's32[1]{0}', space=sflag, size = 0x4, scoped, tag = 'scoped memory for tpu_custom_call.1']
    %12 = vsyncpa [#allocation3], 0
    %13 = vsyncpa [#allocation5], 0
    // Predicated region
    $region2: #{tpu_custom_call.1} parent=1 // pred_check
      _
    $region3: #{tpu_custom_call.1} parent=1 // pred_check_branch
      %15 = sbr.rel (0) target = $region5
    $region4: #{tpu_custom_call.1} parent=1 // pred_region
      %17 = vsyncadd [#allocation3], 0
      %s19 = sshll.u32 %s0, 4
      %s20 = int_to_ptr.hbm [resolvable:$true] %s19
      %s21 = sshll.u32 [#allocation2], 4
      %s22 = int_to_ptr.vmem [resolvable:$true] %s21
      %24 = dma.hbm_to_vmem [thread:$0]  %s20, 128, %s22, [#allocation3]
    $region5: #{tpu_custom_call.1} parent=1 // pred_fallthru
      _
    // Predicated region
    $region6: #{tpu_custom_call.1} parent=1 // pred_check
      _
    $region7: #{tpu_custom_call.1} parent=1 // pred_check_branch
      %26 = sbr.rel (0) target = $region9
    $region8: #{tpu_custom_call.1} parent=1 // pred_region
      %28 = vsyncadd [#allocation5], 0
      %s29 = sshll.u32 %s1, 4
      %s30 = int_to_ptr.hbm [resolvable:$true] %s29
      %s31 = sshll.u32 [#allocation4], 4
      %s32 = int_to_ptr.vmem [resolvable:$true] %s31
      %37 = dma.hbm_to_vmem [thread:$0]  %s30, 512, %s32, [#allocation5], 128, 128, 8
    $region9: #{tpu_custom_call.1} parent=1 // pred_fallthru
      _
    // Predicated region
    $region10: #{tpu_custom_call.1} parent=1 // pred_check
      _
    $region11: #{tpu_custom_call.1} parent=1 // pred_check_branch
      %39 = sbr.rel (0) target = $region13
    $region12: #{tpu_custom_call.1} parent=1 // pred_region
      _
    $region13: #{tpu_custom_call.1} parent=1 // pred_fallthru
      _
    // Predicated region
    $region14: #{tpu_custom_call.1} parent=1 // pred_check
      _
    $region15: #{tpu_custom_call.1} parent=1 // pred_check_branch
      %41 = sbr.rel (0) target = $region17
    $region16: #{tpu_custom_call.1} parent=1 // pred_region
      _
    $region17: #{tpu_custom_call.1} parent=1 // pred_fallthru
      _
    // Predicated region
    $region18: #{tpu_custom_call.1} parent=1 // pred_check
      _
    $region19: #{tpu_custom_call.1} parent=1 // pred_check_branch
      %43 = sbr.rel (0) target = $region21
    $region20: #{tpu_custom_call.1} parent=1 // pred_region
      _
    $region21: #{tpu_custom_call.1} parent=1 // pred_fallthru
      _
    // Predicated region
    $region22: #{tpu_custom_call.1} parent=1 // pred_check
      _
    $region23: #{tpu_custom_call.1} parent=1 // pred_check_branch
      %45 = sbr.rel (0) target = $region25
    $region24: #{tpu_custom_call.1} parent=1 // pred_region
      _
    $region25: #{tpu_custom_call.1} parent=1 // pred_fallthru
      _
    // Predicated region
    $region26: #{tpu_custom_call.1} parent=1 // pred_check
      _
    $region27: #{tpu_custom_call.1} parent=1 // pred_check_branch
      %47 = sbr.rel (0) target = $region29
    $region28: #{tpu_custom_call.1} parent=1 // pred_region
      _
    $region29: #{tpu_custom_call.1} parent=1 // pred_fallthru
      _
    // Predicated region
    $region30: #{tpu_custom_call.1} parent=1 // pred_check
      _
    $region31: #{tpu_custom_call.1} parent=1 // pred_check_branch
      %49 = sbr.rel (0) target = $region33
    $region32: #{tpu_custom_call.1} parent=1 // pred_region
      %51 = dma.done [#allocation3], 128
    $region33: #{tpu_custom_call.1} parent=1 // pred_fallthru
      _
    // Predicated region
    $region34: #{tpu_custom_call.1} parent=1 // pred_check
      _
    $region35: #{tpu_custom_call.1} parent=1 // pred_check_branch
      %53 = sbr.rel (0) target = $region37
    $region36: #{tpu_custom_call.1} parent=1 // pred_region
      %55 = dma.done [#allocation5], 512
    $region37: #{tpu_custom_call.1} parent=1 // pred_fallthru
      _
    %v56 = vld [vmem:[#allocation2] sm:$0xff]
    %v57 = vld [vmem:[#allocation4] sm:$0xff]
    %v58 = vld [vmem:[#allocation4 + $0x8] sm:$0xff]
    %v59 = vld [vmem:[#allocation4 + $0x10] sm:$0xff]
    %v60 = vld [vmem:[#allocation4 + $0x18] sm:$0x3]
    %v61 = vld [vmem:[%s2] sm:$0x1]
    %v63 = vperm.slane %v61, 0
    %vm65 = vcmask 211968
    %v67 = vsel %vm65, %v56, 0
    %vm69 = vcmask 1041408
    %v71 = vsel %vm69, %v60, 0
    %73 = vmatpush.msra.mxu0 0.0
    %74 = vmatpush.msra.mxu0 0.0
    %75 = vmatpush.msra.mxu0 0.0
    %76 = vmatpush.msra.mxu0 0.0
    %77 = vmatpush.msra.mxu0 0.0
    %78 = vmatpush.msra.mxu0 0.0
    %79 = vmatpush.msra.mxu0 0.0
    %80 = vmatpush.msra.mxu0 0.0
    %81 = vmatpush.msra.mxu0 0.0
    %82 = vmatpush.msra.mxu0 0.0
    %83 = vmatpush.msra.mxu0 0.0
    %84 = vmatpush.msra.mxu0 0.0
    %85 = vmatpush.msra.mxu0 %v71
    %86 = vmatpush.msra.mxu0 %v59
    %87 = vmatpush.msra.mxu0 %v58
    %88 = vmatpush.msra.mxu0 %v57
    %89 = vmatmul.f32.gmra.mxu0 %v67
    %v90 = vpop.f32.mrf.mxu0
    %v91 = vadd.f32 %v63, %v90
    %92 = vdwg.mxu0
    %v93 = vmax.f32 %v91, 0.0
    %v94 = vld [vmem:[%s3] sm:$0xff]
    %v95 = vld [vmem:[%s3 + $0x8] sm:$0xff]
    %v96 = vld [vmem:[%s3 + $0x10] sm:$0xff]
    %v97 = vld [vmem:[%s3 + $0x18] sm:$0xff]
    %v98 = vld [vmem:[%s3 + $0x20] sm:$0xff]
    %v99 = vld [vmem:[%s3 + $0x28] sm:$0xff]
    %v100 = vld [vmem:[%s3 + $0x30] sm:$0xff]
    %v101 = vld [vmem:[%s3 + $0x38] sm:$0xff]
    %v102 = vld [vmem:[%s3 + $0x40] sm:$0xff]
    %v103 = vld [vmem:[%s3 + $0x48] sm:$0xff]
    %v104 = vld [vmem:[%s3 + $0x50] sm:$0xff]
    %v105 = vld [vmem:[%s3 + $0x58] sm:$0xff]
    %v106 = vld [vmem:[%s3 + $0x60] sm:$0xff]
    %v107 = vld [vmem:[%s3 + $0x68] sm:$0xff]
    %v108 = vld [vmem:[%s3 + $0x70] sm:$0xff]
    %v109 = vld [vmem:[%s3 + $0x78] sm:$0xff]
    %v110 = vld [vmem:[%s4] sm:$0x1]
    %v112 = vperm.slane %v110, 0
    %114 = vmatpush.msra.mxu0 %v109
    %115 = vmatpush.msra.mxu0 %v108
    %116 = vmatpush.msra.mxu0 %v107
    %117 = vmatpush.msra.mxu0 %v106
    %118 = vmatpush.msra.mxu0 %v105
    %119 = vmatpush.msra.mxu0 %v104
    %120 = vmatpush.msra.mxu0 %v103
    %121 = vmatpush.msra.mxu0 %v102
    %122 = vmatpush.msra.mxu0 %v101
    %123 = vmatpush.msra.mxu0 %v100
    %124 = vmatpush.msra.mxu0 %v99
    %125 = vmatpush.msra.mxu0 %v98
    %126 = vmatpush.msra.mxu0 %v97
    %127 = vmatpush.msra.mxu0 %v96
    %128 = vmatpush.msra.mxu0 %v95
    %129 = vmatpush.msra.mxu0 %v94
    %130 = vmatmul.f32.gmra.mxu0 %v93
    %v131 = vpop.f32.mrf.mxu0
    %v132 = vadd.f32 %v112, %v131
    %133 = vdwg.mxu0
    %v134 = vmax.f32 %v132, 0.0
    %v135 = vld [vmem:[%s5] sm:$0xff]
    %v136 = vld [vmem:[%s5 + $0x8] sm:$0xff]
    %v137 = vld [vmem:[%s5 + $0x10] sm:$0xff]
    %v138 = vld [vmem:[%s5 + $0x18] sm:$0xff]
    %v139 = vld [vmem:[%s5 + $0x20] sm:$0xff]
    %v140 = vld [vmem:[%s5 + $0x28] sm:$0xff]
    %v141 = vld [vmem:[%s5 + $0x30] sm:$0xff]
    %v142 = vld [vmem:[%s5 + $0x38] sm:$0xff]
    %v143 = vld [vmem:[%s5 + $0x40] sm:$0xff]
    %v144 = vld [vmem:[%s5 + $0x48] sm:$0xff]
    %v145 = vld [vmem:[%s5 + $0x50] sm:$0xff]
    %v146 = vld [vmem:[%s5 + $0x58] sm:$0xff]
    %v147 = vld [vmem:[%s5 + $0x60] sm:$0xff]
    %v148 = vld [vmem:[%s5 + $0x68] sm:$0xff]
    %v149 = vld [vmem:[%s5 + $0x70] sm:$0xff]
    %v150 = vld [vmem:[%s5 + $0x78] sm:$0xff]
    %v151 = vld [vmem:[%s6] sm:$0x1]
    %v153 = vperm.slane %v151, 0
    %155 = vmatpush.msra.mxu0 %v150
    %156 = vmatpush.msra.mxu0 %v149
    %157 = vmatpush.msra.mxu0 %v148
    %158 = vmatpush.msra.mxu0 %v147
    %159 = vmatpush.msra.mxu0 %v146
    %160 = vmatpush.msra.mxu0 %v145
    %161 = vmatpush.msra.mxu0 %v144
    %162 = vmatpush.msra.mxu0 %v143
    %163 = vmatpush.msra.mxu0 %v142
    %164 = vmatpush.msra.mxu0 %v141
    %165 = vmatpush.msra.mxu0 %v140
    %166 = vmatpush.msra.mxu0 %v139
    %167 = vmatpush.msra.mxu0 %v138
    %168 = vmatpush.msra.mxu0 %v137
    %169 = vmatpush.msra.mxu0 %v136
    %170 = vmatpush.msra.mxu0 %v135
    %171 = vmatmul.f32.gmra.mxu0 %v134
    %v172 = vpop.f32.mrf.mxu0
    %v173 = vadd.f32 %v153, %v172
    %174 = vdwg.mxu0
    %vm175 = vcmask 31744
    %176 = vst.msk [vmem:[%s7] sm:$0xff] %vm175, %v173
    // Predicated region
    $region38: #{tpu_custom_call.1} parent=1 // pred_check
      _
    $region39: #{tpu_custom_call.1} parent=1 // pred_check_branch
      %178 = sbr.rel (0) target = $region41
    $region40: #{tpu_custom_call.1} parent=1 // pred_region
      _
    $region41: #{tpu_custom_call.1} parent=1 // pred_fallthru
      _
    // Predicated region
    $region42: #{tpu_custom_call.1} parent=1 // pred_check
      _
    $region43: #{tpu_custom_call.1} parent=1 // pred_check_branch
      %180 = sbr.rel (0) target = $region45
    $region44: #{tpu_custom_call.1} parent=1 // pred_region
      _
    $region45: #{tpu_custom_call.1} parent=1 // pred_fallthru
      _
    %181 = vsyncpa [#allocation3], 1
    %182 = vsyncpa [#allocation5], 1

</llo_original>
